<compile_context>
chip_gen: v7x
topology: tpu7x:2x2x1
jax: 0.10.0
libtpu: 0.0.40
codegen_flags: <defaults>
</compile_context>

<pallas_src>
import functools

import jax
import jax.numpy as jnp
from jax.experimental import pallas as pl
from jax.experimental.pallas import tpu as pltpu

# ----------------------------- model dims ----------------------------------
INPUT_SIZE = 16
EMBEDDING_SIZE = 10
HIDDEN_SIZE = 64
OUTPUT_SIZE = 4
NUM_USERS = 20
BATCH = 8

SUBLANE = 8


def _round_up(x, m):
    return (x + m - 1) // m * m


# ----------------------------- Pallas kernel --------------------------------
def _fused_mlp_kernel(ids_ref, x_ref, w1x_ref, embp_ref, w2_ref, b2_ref,
                      out_ref):
    # ids_ref:  i32[tb, 1]       user ids for this batch tile
    # x_ref:    f32[tb, IN]      dense inputs (cast to bf16 in-kernel)
    # w1x_ref:  bf16[IN, H]      fc1 weight rows hit by the dense features
    # embp_ref: bf16[NU_PAD, H]  emb_table @ fc1_w[IN:] + b1 (zero-padded rows)
    # w2_ref:   bf16[H, OUT]
    # b2_ref:   f32[1, OUT]
    # out_ref:  f32[tb, OUT]
    ids = ids_ref[...]                                     # [tb, 1] int32
    x32 = x_ref[...]                                       # [tb, IN] f32
    tb = ids.shape[0]
    nu = embp_ref.shape[0]

    # Embedding lookup as a one-hot MXU matmul: exact row selection, no
    # cross-lane gather.  Padded rows of embp are all-zero and never selected
    # by valid ids; garbage ids in a ragged tail block only pollute rows that
    # are never written back.
    onehot = ids == jax.lax.broadcasted_iota(jnp.int32, (tb, nu), 1)

    # fc1: x @ W1[:IN] + (emb[user_ids] @ W1[IN:] + b1), f32 accumulation.
    h = jnp.dot(x32.astype(w1x_ref.dtype), w1x_ref[...],
                preferred_element_type=jnp.float32)
    h = h + jnp.dot(onehot.astype(embp_ref.dtype), embp_ref[...],
                    preferred_element_type=jnp.float32)
    h = jnp.maximum(h, 0.0)                                # relu (b1 already folded)

    # fc2 (compact output, f32 epilogue).
    y = jnp.dot(h.astype(w2_ref.dtype), w2_ref[...],
                preferred_element_type=jnp.float32)
    out_ref[...] = (y + b2_ref[...]).astype(out_ref.dtype)


# ----------------------------- param prep (once per param set) --------------
def prepare_params(params, compute_dtype=jnp.bfloat16):
    """Fold embedding table + fc1 bias through fc1, pad/pack for the MXU,
    and cast matmul operands to the compute dtype."""
    emb = params["user_embedding"].astype(jnp.float32)     # [NU, E]
    w1 = params["fc1_w"].astype(jnp.float32)               # [IN+E, H]
    b1 = params["fc1_b"].astype(jnp.float32)                # [H]
    w2 = params["fc2_w"].astype(jnp.float32)                # [H, OUT]
    b2 = params["fc2_b"].astype(jnp.float32)                # [OUT]

    in_feat = w1.shape[0] - emb.shape[1]
    w1x = w1[:in_feat]                                       # [IN, H]
    # Each user row becomes emb[u] @ W1[IN:] + b1; the kernel's one-hot matmul
    # then carries the bias along for free.  (b1 at bf16 operand precision.)
    emb_proj = emb @ w1[in_feat:] + b1[None, :]              # [NU, H]
    nu_pad = _round_up(emb_proj.shape[0], 16)                # bf16: 16 rows/vreg
    emb_proj = jnp.pad(emb_proj, ((0, nu_pad - emb_proj.shape[0]), (0, 0)))

    return {
        "w1x": w1x.astype(compute_dtype),
        "emb_proj": emb_proj.astype(compute_dtype),
        "w2": w2.astype(compute_dtype),
        "b2": b2.reshape(1, -1),
        "compute_dtype": compute_dtype,
    }


# ----------------------------- forward --------------------------------------
@functools.partial(jax.jit, static_argnames=("block_batch",))
def _forward_impl(x, user_ids, w1x, emb_proj, w2, b2, *, block_batch):
    batch = x.shape[0]
    in_feat, hidden = w1x.shape
    nu_pad = emb_proj.shape[0]
    out_feat = w2.shape[1]

    # Tile: multiple of 8, capped by block_batch, and small enough that the
    # grid has >= 2 steps once batch > 8 so v7x's two TensorCores both get
    # work; large block_batch keeps step count low on single-core v5e/v6e.
    tb = max(SUBLANE,
             min(_round_up(block_batch, SUBLANE),
                 _round_up(pl.cdiv(batch, 2), SUBLANE)))
    grid = (pl.cdiv(batch, tb),)  # ragged last block handled by Pallas

    ids2d = user_ids.astype(jnp.int32).reshape(-1, 1)

    return pl.pallas_call(
        _fused_mlp_kernel,
        out_shape=jax.ShapeDtypeStruct((batch, out_feat), jnp.float32),
        grid=grid,
        in_specs=[
            pl.BlockSpec((tb, 1), lambda i: (i, 0)),             # user ids
            pl.BlockSpec((tb, in_feat), lambda i: (i, 0)),        # x tile (f32)
            pl.BlockSpec((in_feat, hidden), lambda i: (0, 0)),    # w1x (resident)
            pl.BlockSpec((nu_pad, hidden), lambda i: (0, 0)),     # emb_proj (+b1)
            pl.BlockSpec((hidden, out_feat), lambda i: (0, 0)),   # w2
            pl.BlockSpec((1, out_feat), lambda i: (0, 0)),        # b2
        ],
        out_specs=pl.BlockSpec((tb, out_feat), lambda i: (i, 0)),
        compiler_params=pltpu.CompilerParams(
            dimension_semantics=("parallel",),
        ),
    )(ids2d, x, w1x, emb_proj, w2, b2)


def neural_net_forward(x, user_ids, prep, *, block_batch=2048):
    """Forward pass matching NeuralNetWithUserEmbeddings.forward.

    x:        f32[B, INPUT_SIZE]
    user_ids: i32[B]
    prep:     output of prepare_params(params)
    Returns f32[B, OUTPUT_SIZE].
    """
    return _forward_impl(x, user_ids, prep["w1x"], prep["emb_proj"],
                         prep["w2"], prep["b2"], block_batch=block_batch)


# ----------------------------- params init ----------------------------------
def init_params(key):
    k_emb, k_w1, k_b1, k_w2, k_b2 = jax.random.split(key, 5)
    in1 = INPUT_SIZE + EMBEDDING_SIZE
    bound1 = 1.0 / jnp.sqrt(in1)
    bound2 = 1.0 / jnp.sqrt(HIDDEN_SIZE)
    return {
        "user_embedding": jax.random.normal(
            k_emb, (NUM_USERS, EMBEDDING_SIZE), jnp.float32),
        "fc1_w": jax.random.uniform(
            k_w1, (in1, HIDDEN_SIZE), jnp.float32, -bound1, bound1),
        "fc1_b": jax.random.uniform(
            k_b1, (HIDDEN_SIZE,), jnp.float32, -bound1, bound1),
        "fc2_w": jax.random.uniform(
            k_w2, (HIDDEN_SIZE, OUTPUT_SIZE), jnp.float32, -bound2, bound2),
        "fc2_b": jax.random.uniform(
            k_b2, (OUTPUT_SIZE,), jnp.float32, -bound2, bound2),
    }


def reference_forward(x, user_ids, params):
    user_emb = jnp.take(params["user_embedding"], user_ids, axis=0)
    x_cat = jnp.concatenate([x, user_emb], axis=1)
    h = jnp.maximum(x_cat @ params["fc1_w"] + params["fc1_b"], 0.0)
    return h @ params["fc2_w"] + params["fc2_b"]


if __name__ == "__main__":
    key = jax.random.PRNGKey(0)
    k_params, k_x, k_ids, k_x2, k_ids2 = jax.random.split(key, 5)

    params = init_params(k_params)
    prep = prepare_params(params)  # once per param set

    # Small demo shape matching the module (batch=8, input=16) -> grid=(1,).
    x = jax.random.normal(k_x, (BATCH, INPUT_SIZE), jnp.float32)
    user_ids = jax.random.randint(k_ids, (BATCH,), 0, NUM_USERS, jnp.int32)

    out = jax.block_until_ready(neural_net_forward(x, user_ids, prep))
    ref = reference_forward(x, user_ids, params)
    assert out.shape == (BATCH, OUTPUT_SIZE)
    # bf16 matmul operands (incl. folded emb_proj + b1) vs f32 ref -> loose tol.
    assert jnp.allclose(out, ref, atol=2e-2, rtol=2e-2)

    # Exercise the batch-tiled parallel grid with a ragged last block
    # (batch=200, tb=64 -> grid=(4,), last block only 8 valid rows).
    x2 = jax.random.normal(k_x2, (200, INPUT_SIZE), jnp.float32)
    ids2 = jax.random.randint(k_ids2, (200,), 0, NUM_USERS, jnp.int32)
    out2 = jax.block_until_ready(
        neural_net_forward(x2, ids2, prep, block_batch=64))
    ref2 = reference_forward(x2, ids2, params)
    assert out2.shape == (200, OUTPUT_SIZE)
    assert jnp.allclose(out2, ref2, atol=2e-2, rtol=2e-2)

    print("KERNEL_OK")
</pallas_src>

<mosaic_0001>
module attributes {stable_mosaic.version = 11 : i64} {
  func.func @_fused_mlp_kernel(%arg0: i32, %arg1: memref<8x1xi32, #tpu.memory_space<vmem>>, %arg2: memref<8x16xf32, #tpu.memory_space<vmem>>, %arg3: memref<16x64xbf16, #tpu.memory_space<vmem>>, %arg4: memref<32x64xbf16, #tpu.memory_space<vmem>>, %arg5: memref<64x4xbf16, #tpu.memory_space<vmem>>, %arg6: memref<1x4xf32, #tpu.memory_space<vmem>>, %arg7: memref<8x4xf32, #tpu.memory_space<vmem>>) attributes {dimension_semantics = [#tpu.dimension_semantics<parallel>], iteration_bounds = array<i64: 1>, scalar_prefetch = 0 : i64, scratch_operands = 0 : i64, tpu.core_type = #tpu.core_type<tc>, window_params = [{transform_indices = @transform_0, window_bounds = array<i64: 8, 1>}, {transform_indices = @transform_1, window_bounds = array<i64: 8, 16>}, {pipeline_mode = #tpu.pipeline_mode<synchronous>, transform_indices = @transform_2, window_bounds = array<i64: 16, 64>}, {pipeline_mode = #tpu.pipeline_mode<synchronous>, transform_indices = @transform_3, window_bounds = array<i64: 32, 64>}, {pipeline_mode = #tpu.pipeline_mode<synchronous>, transform_indices = @transform_4, window_bounds = array<i64: 64, 4>}, {pipeline_mode = #tpu.pipeline_mode<synchronous>, transform_indices = @transform_5, window_bounds = array<i64: 1, 4>}, {transform_indices = @transform_6, window_bounds = array<i64: 8, 4>}]} {
    %c0 = arith.constant 0 : index
    %c0_0 = arith.constant 0 : index
    %0 = vector.load %arg1[%c0, %c0_0] : memref<8x1xi32, #tpu.memory_space<vmem>>, vector<8x1xi32>
    %c0_1 = arith.constant 0 : index
    %c0_2 = arith.constant 0 : index
    %1 = vector.load %arg2[%c0_1, %c0_2] : memref<8x16xf32, #tpu.memory_space<vmem>>, vector<8x16xf32>
    %2 = tpu.iota {dimensions = array<i32: 1>} : vector<8x32xi32>
    %3 = vector.broadcast %0 : vector<8x1xi32> to vector<8x32xi32>
    %4 = arith.cmpi eq, %3, %2 : vector<8x32xi32>
    %5 = arith.truncf %1 : vector<8x16xf32> to vector<8x16xbf16>
    %c0_3 = arith.constant 0 : index
    %c0_4 = arith.constant 0 : index
    %6 = vector.load %arg3[%c0_3, %c0_4] : memref<16x64xbf16, #tpu.memory_space<vmem>>, vector<16x64xbf16>
    %cst = arith.constant dense<0.000000e+00> : vector<8x64xf32>
    %7 = tpu.matmul %5, %6, %cst {dimension_numbers = #tpu.dot_dimension_numbers<[1], [0], [0], [1], [0, 0, 1, 1], [], []>} : vector<8x16xbf16>, vector<16x64xbf16>, vector<8x64xf32> -> vector<8x64xf32>
    %8 = arith.extui %4 : vector<8x32xi1> to vector<8x32xi32>
    %9 = arith.sitofp %8 : vector<8x32xi32> to vector<8x32xf32>
    %10 = arith.truncf %9 : vector<8x32xf32> to vector<8x32xbf16>
    %c0_5 = arith.constant 0 : index
    %c0_6 = arith.constant 0 : index
    %11 = vector.load %arg4[%c0_5, %c0_6] : memref<32x64xbf16, #tpu.memory_space<vmem>>, vector<32x64xbf16>
    %cst_7 = arith.constant dense<0.000000e+00> : vector<8x64xf32>
    %12 = tpu.matmul %10, %11, %cst_7 {dimension_numbers = #tpu.dot_dimension_numbers<[1], [0], [0], [1], [0, 0, 1, 1], [], []>} : vector<8x32xbf16>, vector<32x64xbf16>, vector<8x64xf32> -> vector<8x64xf32>
    %13 = arith.addf %7, %12 : vector<8x64xf32>
    %cst_8 = arith.constant 0.000000e+00 : f32
    %14 = vector.broadcast %cst_8 : f32 to vector<8x64xf32>
    %15 = arith.maximumf %13, %14 : vector<8x64xf32>
    %16 = arith.truncf %15 : vector<8x64xf32> to vector<8x64xbf16>
    %c0_9 = arith.constant 0 : index
    %c0_10 = arith.constant 0 : index
    %17 = vector.load %arg5[%c0_9, %c0_10] : memref<64x4xbf16, #tpu.memory_space<vmem>>, vector<64x4xbf16>
    %cst_11 = arith.constant dense<0.000000e+00> : vector<8x4xf32>
    %18 = tpu.matmul %16, %17, %cst_11 {dimension_numbers = #tpu.dot_dimension_numbers<[1], [0], [0], [1], [0, 0, 1, 1], [], []>} : vector<8x64xbf16>, vector<64x4xbf16>, vector<8x4xf32> -> vector<8x4xf32>
    %c0_12 = arith.constant 0 : index
    %c0_13 = arith.constant 0 : index
    %19 = vector.load %arg6[%c0_12, %c0_13] : memref<1x4xf32, #tpu.memory_space<vmem>>, vector<1x4xf32>
    %20 = vector.broadcast %19 : vector<1x4xf32> to vector<8x4xf32>
    %21 = arith.addf %18, %20 : vector<8x4xf32>
    %c0_14 = arith.constant 0 : index
    %c0_15 = arith.constant 0 : index
    %22 = vector.load %arg7[%c0_14, %c0_15] : memref<8x4xf32, #tpu.memory_space<vmem>>, vector<8x4xf32>
    tpu.vector_store %arg7[%c0_14, %c0_15], %21 {strides = array<i32>} : memref<8x4xf32, #tpu.memory_space<vmem>>, vector<8x4xf32>,
    return
  }
  func.func @transform_0(%arg0: i32) -> (i32, i32) {
    %c0_i32 = arith.constant 0 : i32
    %c0_i32_0 = arith.constant 0 : i32
    return %arg0, %c0_i32 : i32, i32
  }
  func.func @transform_1(%arg0: i32) -> (i32, i32) {
    %c0_i32 = arith.constant 0 : i32
    %c0_i32_0 = arith.constant 0 : i32
    return %arg0, %c0_i32 : i32, i32
  }
  func.func @transform_2(%arg0: i32) -> (i32, i32) {
    %c0_i32 = arith.constant 0 : i32
    %c0_i32_0 = arith.constant 0 : i32
    %c0_i32_1 = arith.constant 0 : i32
    return %c0_i32, %c0_i32_0 : i32, i32
  }
  func.func @transform_3(%arg0: i32) -> (i32, i32) {
    %c0_i32 = arith.constant 0 : i32
    %c0_i32_0 = arith.constant 0 : i32
    %c0_i32_1 = arith.constant 0 : i32
    return %c0_i32, %c0_i32_0 : i32, i32
  }
  func.func @transform_4(%arg0: i32) -> (i32, i32) {
    %c0_i32 = arith.constant 0 : i32
    %c0_i32_0 = arith.constant 0 : i32
    %c0_i32_1 = arith.constant 0 : i32
    return %c0_i32, %c0_i32_0 : i32, i32
  }
  func.func @transform_5(%arg0: i32) -> (i32, i32) {
    %c0_i32 = arith.constant 0 : i32
    %c0_i32_0 = arith.constant 0 : i32
    %c0_i32_1 = arith.constant 0 : i32
    return %c0_i32, %c0_i32_0 : i32, i32
  }
  func.func @transform_6(%arg0: i32) -> (i32, i32) {
    %c0_i32 = arith.constant 0 : i32
    %c0_i32_0 = arith.constant 0 : i32
    return %arg0, %c0_i32 : i32, i32
  }
}

</mosaic_0001>

<llo_original>
// kernel: _forward_impl.1
$region0: #{_forward_impl.1}
  #allocation0 [shape = 'u32[]', space=smem, size = 0x4, offset = 0x4, fixed_abs, tag = 'smem constant byte address 0x4 - core index']
  #allocation1 [shape = 'u32[144,128]{1,0:T(1,128)}', space=vmem, size = 0x12000, scoped, tag = 'internal scratch']
  %s0 = inlined_call_operand.vmem [shape: s32[8,1], index: 0, kind: input, shape index: {}]
  %s1 = inlined_call_operand.vmem [shape: f32[8,16], index: 1, kind: input, shape index: {}]
  %s2 = inlined_call_operand.vmem [shape: bf16[16,64], index: 2, kind: input, shape index: {}]
  %s3 = inlined_call_operand.vmem [shape: bf16[32,64], index: 3, kind: input, shape index: {}]
  %s4 = inlined_call_operand.vmem [shape: bf16[64,4], index: 4, kind: input, shape index: {}]
  %s5 = inlined_call_operand.vmem [shape: f32[1,4], index: 5, kind: input, shape index: {}]
  %s6 = inlined_call_operand.vmem [shape: f32[8,4], index: 6, kind: output, shape index: {}]
  %s7 = sld [smem:[#allocation0]]
  $region34: #{_forward_impl.1} parent=0
    _
  %s9 = ssub.s32 1, %s7
  %s10 = scalar_select 0, %s9, %s7
  // Predicated region
  $region2: #{_forward_impl.1} parent=0 // pred_check
    _
  $region3: #{_forward_impl.1} parent=0 // pred_check_branch
    %12 = sbr.rel (0) target = $region5
  $region4: #{_forward_impl.1} parent=0 // pred_region
    _
  $region5: #{_forward_impl.1} parent=0 // pred_fallthru
    _
  // Predicated region
  $region6: #{_forward_impl.1} parent=0 // pred_check
    _
  $region7: #{_forward_impl.1} parent=0 // pred_check_branch
    %14 = sbr.rel (0) target = $region9
  $region8: #{_forward_impl.1} parent=0 // pred_region
    _
  $region9: #{_forward_impl.1} parent=0 // pred_fallthru
    _
  // Predicated region
  $region10: #{_forward_impl.1} parent=0 // pred_check
    _
  $region11: #{_forward_impl.1} parent=0 // pred_check_branch
    %16 = sbr.rel (0) target = $region13
  $region12: #{_forward_impl.1} parent=0 // pred_region
    _
  $region13: #{_forward_impl.1} parent=0 // pred_fallthru
    _
  // Predicated region
  $region14: #{_forward_impl.1} parent=0 // pred_check
    _
  $region15: #{_forward_impl.1} parent=0 // pred_check_branch
    %18 = sbr.rel (0) target = $region17
  $region16: #{_forward_impl.1} parent=0 // pred_region
    _
  $region17: #{_forward_impl.1} parent=0 // pred_fallthru
    _
  // Predicated region
  $region18: #{_forward_impl.1} parent=0 // pred_check
    _
  $region19: #{_forward_impl.1} parent=0 // pred_check_branch
    %20 = sbr.rel (0) target = $region21
  $region20: #{_forward_impl.1} parent=0 // pred_region
    _
  $region21: #{_forward_impl.1} parent=0 // pred_fallthru
    _
  // Predicated region
  $region22: #{_forward_impl.1} parent=0 // pred_check
    _
  $region23: #{_forward_impl.1} parent=0 // pred_check_branch
    %22 = sbr.rel (0) target = $region25
  $region24: #{_forward_impl.1} parent=0 // pred_region
    _
  $region25: #{_forward_impl.1} parent=0 // pred_fallthru
    _
  %v24 = vld [vmem:[%s0] sm:$0xff]
  %v25 = vld [vmem:[%s1] sm:$0xff]
  %v26 = vlaneseq
  %v27 = vand.u32 %v26, 127
  %28 = vset.pattern.permute.xlu0 0
  %29 = vperm.xlu0 %28, %v24
  %v30 = vpop.permute.xlu0 %29
  %vm31 = vcmp.eq.s32.totalorder %v30, %v27
  %v32 = vpack.c.bf16 %v25, %v25
  %v33 = vld [vmem:[%s2] sm:$0xf]
  %v34 = vld [vmem:[%s2 + $0x4] sm:$0xf]
  %v35 = vsel %vm31, 1, 0
  %v36 = vcvt.s32.f32 %v35
  %v37 = vpack.c.bf16 %v36, %v36
  %v38 = vld [vmem:[%s3] sm:$0xf]
  %v39 = vld [vmem:[%s3 + $0x4] sm:$0xf]
  %v40 = vld [vmem:[%s3 + $0x8] sm:$0xf]
  %v41 = vld [vmem:[%s3 + $0xc] sm:$0xf]
  %v46 = vunpack.c.l.b16 %v38
  %v47 = vunpack.c.l.b16 %v39
  %v48 = vunpack.c.l.b16 %v40
  %v49 = vunpack.c.l.b16 %v41
  %v50 = vpack.c.b16 %v47, %v46
  %v51 = vpack.c.b16 %v49, %v48
  %vm54 = vcmask 261120
  %v56 = vsel %vm54, %v37, 0
  %58 = vmatprep.subr.bf16.mxu0 0
  %59 = vmatpush1.bf16.msra.mxu0 %v50
  %60 = vmatprep.subr.bf16.mxu0 0
  %61 = vmatpush1.bf16.msra.mxu0 %v51
  %62 = vmatprep.subr.bf16.mxu0 0
  %63 = vmatpush1.bf16.msra.mxu0 0
  %64 = vmatprep.subr.bf16.mxu0 0
  %65 = vmatpush1.bf16.msra.mxu0 0
  %66 = vmatprep.subr.bf16.mxu0 0
  %67 = vmatpush1.bf16.msra.mxu0 0
  %68 = vmatprep.subr.bf16.mxu0 0
  %69 = vmatpush1.bf16.msra.mxu0 0
  %70 = vmatprep.subr.bf16.mxu0 0
  %71 = vmatpush1.bf16.msra.mxu0 0
  %72 = vmatprep.subr.bf16.mxu0 0
  %73 = vmatpush1.bf16.msra.mxu0 0
  %74 = vmatprep.subr.bf16.mxu0 0
  %75 = vmatpush1.bf16.msra.mxu0 0
  %76 = vmatprep.subr.bf16.mxu0 0
  %77 = vmatpush1.bf16.msra.mxu0 0
  %78 = vmatprep.subr.bf16.mxu0 0
  %79 = vmatpush1.bf16.msra.mxu0 0
  %80 = vmatprep.subr.bf16.mxu0 0
  %81 = vmatpush1.bf16.msra.mxu0 0
  %82 = vmatprep.subr.bf16.mxu0 0
  %83 = vmatpush1.bf16.msra.mxu0 0
  %84 = vmatprep.subr.bf16.mxu0 0
  %85 = vmatpush1.bf16.msra.mxu0 0
  %86 = vmatprep.subr.bf16.mxu0 0
  %87 = vmatpush1.bf16.msra.mxu0 0
  %88 = vmatprep.subr.bf16.mxu0 0
  %89 = vmatpush1.bf16.msra.mxu0 0
  %90 = vmatprep.mubr.bf16.mxu0 0
  %91 = vmatmul.mubr.bf16.gmra.mrb[0].mxu0 %v56
  %v92 = vpop.f32.mrb[0].mxu0
  %v93 = vadd.f32 0.0, %v92
  %v94 = vpop.f32.mrb[0].mxu0
  %v95 = vpop.f32.mrb[0].mxu0
  %v96 = vpop.f32.mrb[0].mxu0
  %97 = vdwg.mxu0
  %v100 = vunpack.c.l.b16 %v33
  %v101 = vunpack.c.l.b16 %v34
  %v102 = vpack.c.b16 %v101, %v100
  %vm104 = vcmask 130048
  %v106 = vsel %vm104, %v32, 0
  %108 = vmatprep.subr.bf16.mxu0 0
  %109 = vmatpush1.bf16.msra.mxu0 %v102
  %110 = vmatprep.subr.bf16.mxu0 0
  %111 = vmatpush1.bf16.msra.mxu0 0
  %112 = vmatprep.subr.bf16.mxu0 0
  %113 = vmatpush1.bf16.msra.mxu0 0
  %114 = vmatprep.subr.bf16.mxu0 0
  %115 = vmatpush1.bf16.msra.mxu0 0
  %116 = vmatprep.subr.bf16.mxu0 0
  %117 = vmatpush1.bf16.msra.mxu0 0
  %118 = vmatprep.subr.bf16.mxu0 0
  %119 = vmatpush1.bf16.msra.mxu0 0
  %120 = vmatprep.subr.bf16.mxu0 0
  %121 = vmatpush1.bf16.msra.mxu0 0
  %122 = vmatprep.subr.bf16.mxu0 0
  %123 = vmatpush1.bf16.msra.mxu0 0
  %124 = vmatprep.subr.bf16.mxu0 0
  %125 = vmatpush1.bf16.msra.mxu0 0
  %126 = vmatprep.subr.bf16.mxu0 0
  %127 = vmatpush1.bf16.msra.mxu0 0
  %128 = vmatprep.subr.bf16.mxu0 0
  %129 = vmatpush1.bf16.msra.mxu0 0
  %130 = vmatprep.subr.bf16.mxu0 0
  %131 = vmatpush1.bf16.msra.mxu0 0
  %132 = vmatprep.subr.bf16.mxu0 0
  %133 = vmatpush1.bf16.msra.mxu0 0
  %134 = vmatprep.subr.bf16.mxu0 0
  %135 = vmatpush1.bf16.msra.mxu0 0
  %136 = vmatprep.subr.bf16.mxu0 0
  %137 = vmatpush1.bf16.msra.mxu0 0
  %138 = vmatprep.subr.bf16.mxu0 0
  %139 = vmatpush1.bf16.msra.mxu0 0
  %140 = vmatprep.mubr.bf16.mxu0 0
  %141 = vmatmul.mubr.bf16.gmra.mrb[0].mxu0 %v106
  %v142 = vpop.f32.mrb[0].mxu0
  %v143 = vadd.f32 %v93, %v142
  %v144 = vpop.f32.mrb[0].mxu0
  %v145 = vpop.f32.mrb[0].mxu0
  %v146 = vpop.f32.mrb[0].mxu0
  %147 = vdwg.mxu0
  %v148 = vmax.f32 %v143, 0.0
  %v149 = vpack.c.bf16 %v148, %v148
  %v150 = vld [vmem:[%s4] sm:$0xf]
  %v151 = vld [vmem:[%s4 + $0x4] sm:$0xf]
  %v152 = vld [vmem:[%s4 + $0x8] sm:$0xf]
  %v153 = vld [vmem:[%s4 + $0xc] sm:$0xf]
  %v154 = vld [vmem:[%s4 + $0x10] sm:$0xf]
  %v155 = vld [vmem:[%s4 + $0x14] sm:$0xf]
  %v156 = vld [vmem:[%s4 + $0x18] sm:$0xf]
  %v157 = vld [vmem:[%s4 + $0x1c] sm:$0xf]
  %v158 = vld [vmem:[%s5] sm:$0x1]
  %v160 = vlaneseq
  %v161 = vshrl.u32 %v160, 7
  %v162 = vsub.s32 0, %v161
  %v163 = vrot.slane %v158, %v162
  %v173 = vunpack.c.l.b16 %v150
  %v174 = vunpack.c.l.b16 %v151
  %v175 = vunpack.c.l.b16 %v152
  %v176 = vunpack.c.l.b16 %v153
  %v177 = vunpack.c.l.b16 %v154
  %v178 = vunpack.c.l.b16 %v155
  %v179 = vunpack.c.l.b16 %v156
  %v180 = vunpack.c.l.b16 %v157
  %v181 = vpack.c.b16 %v174, %v173
  %v182 = vpack.c.b16 %v176, %v175
  %v183 = vpack.c.b16 %v178, %v177
  %v184 = vpack.c.b16 %v180, %v179
  %vm189 = vcmask 523264
  %v191 = vsel %vm189, %v149, 0
  %193 = vmatprep.subr.bf16.mxu0 0
  %194 = vmatpush1.bf16.msra.mxu0 %v181
  %195 = vmatprep.subr.bf16.mxu0 0
  %196 = vmatpush1.bf16.msra.mxu0 %v182
  %197 = vmatprep.subr.bf16.mxu0 0
  %198 = vmatpush1.bf16.msra.mxu0 %v183
  %199 = vmatprep.subr.bf16.mxu0 0
  %200 = vmatpush1.bf16.msra.mxu0 %v184
  %201 = vmatprep.subr.bf16.mxu0 0
  %202 = vmatpush1.bf16.msra.mxu0 0
  %203 = vmatprep.subr.bf16.mxu0 0
  %204 = vmatpush1.bf16.msra.mxu0 0
  %205 = vmatprep.subr.bf16.mxu0 0
  %206 = vmatpush1.bf16.msra.mxu0 0
  %207 = vmatprep.subr.bf16.mxu0 0
  %208 = vmatpush1.bf16.msra.mxu0 0
  %209 = vmatprep.subr.bf16.mxu0 0
  %210 = vmatpush1.bf16.msra.mxu0 0
  %211 = vmatprep.subr.bf16.mxu0 0
  %212 = vmatpush1.bf16.msra.mxu0 0
  %213 = vmatprep.subr.bf16.mxu0 0
  %214 = vmatpush1.bf16.msra.mxu0 0
  %215 = vmatprep.subr.bf16.mxu0 0
  %216 = vmatpush1.bf16.msra.mxu0 0
  %217 = vmatprep.subr.bf16.mxu0 0
  %218 = vmatpush1.bf16.msra.mxu0 0
  %219 = vmatprep.subr.bf16.mxu0 0
  %220 = vmatpush1.bf16.msra.mxu0 0
  %221 = vmatprep.subr.bf16.mxu0 0
  %222 = vmatpush1.bf16.msra.mxu0 0
  %223 = vmatprep.subr.bf16.mxu0 0
  %224 = vmatpush1.bf16.msra.mxu0 0
  %225 = vmatprep.mubr.bf16.mxu0 0
  %226 = vmatmul.mubr.bf16.gmra.mrb[0].mxu0 %v191
  %v227 = vpop.f32.mrb[0].mxu0
  %v228 = vadd.f32 %v163, %v227
  %v229 = vpop.f32.mrb[0].mxu0
  %v230 = vpop.f32.mrb[0].mxu0
  %v231 = vpop.f32.mrb[0].mxu0
  %232 = vdwg.mxu0
  %vm233 = vcmask 31744
  %234 = vst.msk [vmem:[%s6] sm:$0xff] %vm233, %v228
  // Predicated region
  $region26: #{_forward_impl.1} parent=0 // pred_check
    _
  $region27: #{_forward_impl.1} parent=0 // pred_check_branch
    %236 = sbr.rel (0) target = $region29
  $region28: #{_forward_impl.1} parent=0 // pred_region
    _
  $region29: #{_forward_impl.1} parent=0 // pred_fallthru
    _
  // Predicated region
  $region30: #{_forward_impl.1} parent=0 // pred_check
    _
  $region31: #{_forward_impl.1} parent=0 // pred_check_branch
    %238 = sbr.rel (0) target = $region33
  $region32: #{_forward_impl.1} parent=0 // pred_region
    _
  $region33: #{_forward_impl.1} parent=0 // pred_fallthru
    _

</llo_original>
